<compile_context>
chip_gen: v5e
topology: v5e:2x2
jax: 0.10.0
libtpu: 0.0.40
codegen_flags: <defaults>
</compile_context>

<pallas_src>
import functools

import jax
import jax.numpy as jnp
from jax import lax
from jax.experimental import pallas as pl
from jax.experimental.pallas import tpu as pltpu

_TARGET_PARALLEL_BLOCKS = 4          # >= 2 TCs x 2 so v7x megacore never idles


# ----------------------------------------------------------------------------- kernels


def _temporal_block_mask(starts_ref, b, pos, span_len):
    """Rebuild the (TS, 1) bool temporal mask for batch row `b` from SMEM span starts."""
    k = starts_ref.shape[1]           # static number of spans
    st = starts_ref[b, 0]
    m = (pos >= st) & (pos < st + span_len)
    for j in range(1, k):             # K is tiny and static -> unrolled VPU filler
        st = starts_ref[b, j]
        m = m | ((pos >= st) & (pos < st + span_len))
    return m


def _mask_fill_kernel(starts_ref, seqs_ref, embed_ref, out_ref, *, span_len):
    """One grid step == one (batch row, time tile).

    starts_ref : (N, K)     int32 span starts in SMEM (scalar prefetch)
    seqs_ref   : (1, TS, M) input features
    embed_ref  : (1, M)     temporal mask embedding (seqs dtype)
    out_ref    : (1, TS, M) masked features (aliased with seqs in HBM)
    """
    b = pl.program_id(0)
    t = pl.program_id(1)
    ts = seqs_ref.shape[1]
    x = seqs_ref[0]                                               # (TS, M)
    e = embed_ref[...]                                            # (1, M)
    pos = t * ts + lax.broadcasted_iota(jnp.int32, (ts, 1), 0)    # (TS, 1)
    m = _temporal_block_mask(starts_ref, b, pos, span_len)        # (TS, 1) bool
    out_ref[0] = jnp.where(m, e, x).astype(out_ref.dtype)


def _mask_fill_spatial_kernel(starts_ref, seqs_ref, embed_ref, smask_ref, out_ref,
                              *, span_len):
    """Same as above plus spatial feature zeroing (select, not multiply).

    smask_ref : (1, 1, M)  spatial mask over features (nonzero = zero this feature)
    """
    b = pl.program_id(0)
    t = pl.program_id(1)
    ts = seqs_ref.shape[1]
    x = seqs_ref[0]                                               # (TS, M)
    e = embed_ref[...]                                            # (1, M)
    pos = t * ts + lax.broadcasted_iota(jnp.int32, (ts, 1), 0)    # (TS, 1)
    m = _temporal_block_mask(starts_ref, b, pos, span_len)        # (TS, 1) bool
    y = jnp.where(m, e, x)                                        # temporal fill first
    sm = smask_ref[0] != 0                                        # (1, M) bool
    out_ref[0] = jnp.where(sm, jnp.zeros_like(y), y).astype(out_ref.dtype)


# ----------------------------------------------------------------------------- tiling / VMEM


def _vmem_policy():
    """Generation-aware VMEM limit: ~100 MiB on 128-MiB chips (v5e/v6e),
    ~44 MiB on 64-MiB-per-TC chips (v7x).  Conservative fallback if the query fails."""
    try:
        info = pltpu.get_tpu_info()
        phys = getattr(info, "vmem_capacity_bytes", 64 * 1024 * 1024)
    except Exception:
        phys = 64 * 1024 * 1024
    if phys >= 128 * 1024 * 1024:
        return 100 * 1024 * 1024
    return 44 * 1024 * 1024


def _pick_time_tile(seq_len, model_dim, itemsize, vmem_limit_bytes, min_time_blocks=1):
    """Largest time tile such that the 4 big double-buffered seqs tiles fit in
    ~75% of the declared VMEM limit, rounded to the dtype's packed sublane
    multiple, and small enough to yield >= min_time_blocks time tiles."""
    packing = 32 // itemsize                       # 8 f32 / 16 bf16 / 32 int8
    budget = (vmem_limit_bytes * 3) // 4
    max_ts = max(budget // (4 * model_dim * itemsize), packing)
    if min_time_blocks > 1:
        max_ts = min(max_ts, -(-seq_len // min_time_blocks))
    if seq_len <= max_ts:
        return seq_len                             # whole-row tile (full-dim block)
    ts = max((max_ts // packing) * packing, packing)
    return min(ts, seq_len)


# ----------------------------------------------------------------------------- pallas wrapper


@functools.partial(jax.jit, static_argnames=("span_len",), donate_argnums=(1,))
def _masked_fill(t_starts, seqs, embed, smask, *, span_len):
    """seqs must be donated by the caller so input_output_aliases avoids a copy."""
    n, s, m = seqs.shape
    vmem_limit = _vmem_policy()
    min_time_blocks = max(1, -(-_TARGET_PARALLEL_BLOCKS // n))
    ts = _pick_time_tile(s, m, seqs.dtype.itemsize, vmem_limit, min_time_blocks)
    grid = (n, pl.cdiv(s, ts))

    in_specs = [
        pl.BlockSpec((1, ts, m), lambda b, t, st: (b, t, 0)),   # seqs tile
        pl.BlockSpec((1, m), lambda b, t, st: (0, 0)),          # embed (shared)
    ]
    inputs = [seqs, embed]

    if smask is not None:
        in_specs.append(pl.BlockSpec((1, 1, m), lambda b, t, st: (b, 0, 0)))
        inputs.append(smask)
        kernel = functools.partial(_mask_fill_spatial_kernel, span_len=span_len)
    else:
        kernel = functools.partial(_mask_fill_kernel, span_len=span_len)

    return pl.pallas_call(
        kernel,
        out_shape=jax.ShapeDtypeStruct((n, s, m), seqs.dtype),
        grid_spec=pltpu.PrefetchScalarGridSpec(
            num_scalar_prefetch=1,
            grid=grid,
            in_specs=in_specs,
            out_specs=pl.BlockSpec((1, ts, m), lambda b, t, st: (b, t, 0)),
        ),
        # flattened inputs: [t_starts(0), seqs(1), embed(2), (smask 3)] -> alias seqs.
        input_output_aliases={1: 0},
        compiler_params=pltpu.CompilerParams(
            dimension_semantics=("parallel", "parallel"),
            vmem_limit_bytes=vmem_limit),
    )(t_starts, *inputs)


# ----------------------------------------------------------------------------- glue


def _compute_span_starts(key, batch_size, row_len, span_len, max_mask_prob,
                         min_num_spans):
    """compute_row_mask span-start sampling (all rows assumed full length).
    # TODO(synk): fairseq2's compute_row_mask samples starts *without* replacement;
    # here they are i.i.d. uniform, so masked-frame-count distribution differs slightly."""
    num_spans = int(max_mask_prob / span_len * row_len)
    num_spans = max(num_spans, min_num_spans)
    span_start_range = max(row_len - span_len + 1, 1)
    rand = jax.random.uniform(key, (batch_size, num_spans), dtype=jnp.float32)
    return (span_start_range * rand).astype(jnp.int32)          # (N, K)


def _spans_to_bool_mask(starts, row_len, span_len):
    """(N, K) span starts -> (N, row_len) boolean mask (plain-JAX glue, tiny)."""
    pos = jnp.arange(row_len, dtype=jnp.int32)[None, None, :]   # (1, 1, L)
    st = starts[:, :, None]                                     # (N, K, 1)
    hit = (pos >= st) & (pos < st + span_len)                   # (N, K, L)
    return jnp.any(hit, axis=1)                                 # (N, L) bool


class StandardWav2Vec2MaskerPallas:
    def __init__(self, model_dim, temporal_span_len=10, max_temporal_mask_prob=0.65,
                 min_num_temporal_mask_spans=2, spatial_span_len=10,
                 max_spatial_mask_prob=0.0, min_num_spatial_mask_spans=2,
                 *, param_key=jax.random.PRNGKey(1)):
        if max_temporal_mask_prob <= 0.0:
            raise ValueError("`max_temporal_mask_prob` must be greater than 0.")
        self.model_dim = model_dim
        self.temporal_span_len = temporal_span_len
        self.max_temporal_mask_prob = max_temporal_mask_prob
        self.min_num_temporal_mask_spans = min_num_temporal_mask_spans
        self.spatial_span_len = spatial_span_len
        self.max_spatial_mask_prob = max_spatial_mask_prob
        self.min_num_spatial_mask_spans = min_num_spatial_mask_spans
        # nn.init.uniform_ -> U[0, 1); deterministic init in-script.
        self.temporal_mask_embed = jax.random.uniform(
            param_key, (model_dim,), dtype=jnp.float32)

    def __call__(self, seqs, rng_key):
        """NOTE: `seqs` is DONATED (overwritten in place via input_output_aliases);
        pass a copy if the caller still needs the unmasked features.
        # TODO(synk): packed batches / ragged seq_lens (BatchLayout) not supported;
        # all rows are assumed to have full length S.
        # TODO(synk): for model_dim < 128 the output blocks are lane-sparse; a
        # wrapper-side reshape folding time into the lane axis would avoid masked
        # partial stores (irrelevant for typical wav2vec2 dims of 768/1024)."""
        n, s, m = seqs.shape
        k_temp, k_spat = jax.random.split(rng_key)

        # --- temporal mask spans; bool mask built in glue only for the return value.
        t_starts = _compute_span_starts(
            k_temp, n, s, self.temporal_span_len, self.max_temporal_mask_prob,
            self.min_num_temporal_mask_spans)
        temporal_mask = _spans_to_bool_mask(t_starts, s, self.temporal_span_len)

        embed = self.temporal_mask_embed.astype(seqs.dtype)[None, :]          # (1, M)

        if self.max_spatial_mask_prob > 0.0:
            s_starts = _compute_span_starts(
                k_spat, n, m, self.spatial_span_len, self.max_spatial_mask_prob,
                self.min_num_spatial_mask_spans)
            smask = _spans_to_bool_mask(s_starts, m, self.spatial_span_len)
            smask = smask.astype(seqs.dtype)[:, None, :]                      # (N,1,M)
        else:
            smask = None

        out = _masked_fill(t_starts, seqs, embed, smask,
                           span_len=self.temporal_span_len)
        return out, temporal_mask


# ----------------------------------------------------------------------------- main


if __name__ == "__main__":
    N, S, M = 2, 64, 128

    key = jax.random.PRNGKey(0)
    k_data, k_mask = jax.random.split(key)
    seqs = jax.random.normal(k_data, (N, S, M), dtype=jnp.float32)

    # ---------------- temporal-only (default fairseq2 config: spatial off) --------
    masker = StandardWav2Vec2MaskerPallas(
        model_dim=M,
        temporal_span_len=10,
        max_temporal_mask_prob=0.65,
        min_num_temporal_mask_spans=2,
        spatial_span_len=4,
        max_spatial_mask_prob=0.0,
    )

    # Pass a copy: seqs is donated / overwritten by the kernel.
    out, temporal_mask = masker(jnp.copy(seqs), k_mask)
    out = jax.block_until_ready(out)
    temporal_mask = jax.block_until_ready(temporal_mask)

    embed = masker.temporal_mask_embed
    ref = jnp.where(temporal_mask[:, :, None], embed[None, None, :], seqs)

    assert out.shape == seqs.shape and out.dtype == seqs.dtype
    assert temporal_mask.shape == (N, S) and temporal_mask.dtype == jnp.bool_
    assert bool(jnp.any(temporal_mask))                # max_temporal_mask_prob > 0
    assert jnp.allclose(out, ref, atol=1e-6, rtol=1e-6)

    # ---------------- spatial masking enabled (second specialized kernel) ---------
    masker_sp = StandardWav2Vec2MaskerPallas(
        model_dim=M,
        temporal_span_len=10,
        max_temporal_mask_prob=0.65,
        min_num_temporal_mask_spans=2,
        spatial_span_len=4,
        max_spatial_mask_prob=0.5,
        min_num_spatial_mask_spans=2,
    )
    out2, tmask2 = masker_sp(jnp.copy(seqs), k_mask)
    out2 = jax.block_until_ready(out2)

    # Rebuild the spatial mask exactly as __call__ does (same key split / params).
    _, k_spat = jax.random.split(k_mask)
    s_starts = _compute_span_starts(k_spat, N, M, 4, 0.5, 2)
    smask_bool = _spans_to_bool_mask(s_starts, M, 4)                      # (N, M)
    ref2 = jnp.where(smask_bool[:, None, :], jnp.zeros((), seqs.dtype),
                     jnp.where(tmask2[:, :, None], embed[None, None, :], seqs))

    assert bool(jnp.any(smask_bool))                   # some features were zeroed
    assert jnp.allclose(out2, ref2, atol=1e-6, rtol=1e-6)

    print("KERNEL_OK")
</pallas_src>

<mosaic_0001>
module attributes {stable_mosaic.version = 11 : i64} {
  func.func @_mask_fill_kernel(%arg0: i32, %arg1: i32, %arg2: memref<2x4xi32, #tpu.memory_space<smem>>, %arg3: memref<1x32x128xf32, #tpu.memory_space<vmem>>, %arg4: memref<1x128xf32, #tpu.memory_space<vmem>>, %arg5: memref<1x32x128xf32, #tpu.memory_space<vmem>>) attributes {dimension_semantics = [#tpu.dimension_semantics<parallel>, #tpu.dimension_semantics<parallel>], iteration_bounds = array<i64: 2, 2>, scalar_prefetch = 1 : i64, scratch_operands = 0 : i64, tpu.core_type = #tpu.core_type<tc>, window_params = [{transform_indices = @transform_0, window_bounds = array<i64: 1, 32, 128>}, {pipeline_mode = #tpu.pipeline_mode<synchronous>, transform_indices = @transform_1, window_bounds = array<i64: 1, 128>}, {transform_indices = @transform_2, window_bounds = array<i64: 1, 32, 128>}]} {
    %c0 = arith.constant 0 : index
    %c0_0 = arith.constant 0 : index
    %c0_1 = arith.constant 0 : index
    %0 = vector.load %arg3[%c0, %c0_0, %c0_1] : memref<1x32x128xf32, #tpu.memory_space<vmem>>, vector<1x32x128xf32>
    %1 = vector.shape_cast %0 : vector<1x32x128xf32> to vector<32x128xf32>
    %c0_2 = arith.constant 0 : index
    %c0_3 = arith.constant 0 : index
    %2 = vector.load %arg4[%c0_2, %c0_3] : memref<1x128xf32, #tpu.memory_space<vmem>>, vector<1x128xf32>
    %c32_i32 = arith.constant 32 : i32
    %3 = arith.muli %arg1, %c32_i32 : i32
    %4 = tpu.iota {dimensions = array<i32: 0>} : vector<32x1xi32>
    %5 = vector.broadcast %3 : i32 to vector<32x1xi32>
    %6 = arith.addi %5, %4 : vector<32x1xi32>
    %7 = arith.index_cast %arg0 : i32 to index
    %c0_4 = arith.constant 0 : index
    %8 = memref.load %arg2[%7, %c0_4] : memref<2x4xi32, #tpu.memory_space<smem>>
    %9 = vector.broadcast %8 : i32 to vector<32x1xi32>
    %10 = arith.cmpi sge, %6, %9 : vector<32x1xi32>
    %c10_i32 = arith.constant 10 : i32
    %11 = arith.addi %8, %c10_i32 : i32
    %12 = vector.broadcast %11 : i32 to vector<32x1xi32>
    %13 = arith.cmpi slt, %6, %12 : vector<32x1xi32>
    %14 = arith.andi %10, %13 : vector<32x1xi1>
    %15 = arith.index_cast %arg0 : i32 to index
    %c1 = arith.constant 1 : index
    %16 = memref.load %arg2[%15, %c1] : memref<2x4xi32, #tpu.memory_space<smem>>
    %17 = vector.broadcast %16 : i32 to vector<32x1xi32>
    %18 = arith.cmpi sge, %6, %17 : vector<32x1xi32>
    %c10_i32_5 = arith.constant 10 : i32
    %19 = arith.addi %16, %c10_i32_5 : i32
    %20 = vector.broadcast %19 : i32 to vector<32x1xi32>
    %21 = arith.cmpi slt, %6, %20 : vector<32x1xi32>
    %22 = arith.andi %18, %21 : vector<32x1xi1>
    %23 = arith.ori %14, %22 : vector<32x1xi1>
    %24 = arith.index_cast %arg0 : i32 to index
    %c2 = arith.constant 2 : index
    %25 = memref.load %arg2[%24, %c2] : memref<2x4xi32, #tpu.memory_space<smem>>
    %26 = vector.broadcast %25 : i32 to vector<32x1xi32>
    %27 = arith.cmpi sge, %6, %26 : vector<32x1xi32>
    %c10_i32_6 = arith.constant 10 : i32
    %28 = arith.addi %25, %c10_i32_6 : i32
    %29 = vector.broadcast %28 : i32 to vector<32x1xi32>
    %30 = arith.cmpi slt, %6, %29 : vector<32x1xi32>
    %31 = arith.andi %27, %30 : vector<32x1xi1>
    %32 = arith.ori %23, %31 : vector<32x1xi1>
    %33 = arith.index_cast %arg0 : i32 to index
    %c3 = arith.constant 3 : index
    %34 = memref.load %arg2[%33, %c3] : memref<2x4xi32, #tpu.memory_space<smem>>
    %35 = vector.broadcast %34 : i32 to vector<32x1xi32>
    %36 = arith.cmpi sge, %6, %35 : vector<32x1xi32>
    %c10_i32_7 = arith.constant 10 : i32
    %37 = arith.addi %34, %c10_i32_7 : i32
    %38 = vector.broadcast %37 : i32 to vector<32x1xi32>
    %39 = arith.cmpi slt, %6, %38 : vector<32x1xi32>
    %40 = arith.andi %36, %39 : vector<32x1xi1>
    %41 = arith.ori %32, %40 : vector<32x1xi1>
    %42 = vector.shape_cast %41 : vector<32x1xi1> to vector<32x1xi1>
    %43 = vector.broadcast %42 : vector<32x1xi1> to vector<32x128xi1>
    %44 = vector.shape_cast %2 : vector<1x128xf32> to vector<1x128xf32>
    %45 = vector.broadcast %44 : vector<1x128xf32> to vector<32x128xf32>
    %46 = arith.select %43, %45, %1 : vector<32x128xi1>, vector<32x128xf32>
    %c0_8 = arith.constant 0 : index
    %c0_9 = arith.constant 0 : index
    %c0_10 = arith.constant 0 : index
    %47 = vector.load %arg5[%c0_8, %c0_9, %c0_10] : memref<1x32x128xf32, #tpu.memory_space<vmem>>, vector<1x32x128xf32>
    %48 = vector.shape_cast %47 : vector<1x32x128xf32> to vector<32x128xf32>
    %49 = vector.shape_cast %46 : vector<32x128xf32> to vector<1x32x128xf32>
    tpu.vector_store %arg5[%c0_8, %c0_9, %c0_10], %49 {strides = array<i32>} : memref<1x32x128xf32, #tpu.memory_space<vmem>>, vector<1x32x128xf32>,
    return
  }
  func.func @transform_0(%arg0: i32, %arg1: i32, %arg2: memref<2x4xi32, #tpu.memory_space<smem>>) -> (i32, i32, i32) {
    %c0_i32 = arith.constant 0 : i32
    %c0_i32_0 = arith.constant 0 : i32
    return %arg0, %arg1, %c0_i32 : i32, i32, i32
  }
  func.func @transform_1(%arg0: i32, %arg1: i32, %arg2: memref<2x4xi32, #tpu.memory_space<smem>>) -> (i32, i32) {
    %c0_i32 = arith.constant 0 : i32
    %c0_i32_0 = arith.constant 0 : i32
    %c0_i32_1 = arith.constant 0 : i32
    return %c0_i32, %c0_i32_0 : i32, i32
  }
  func.func @transform_2(%arg0: i32, %arg1: i32, %arg2: memref<2x4xi32, #tpu.memory_space<smem>>) -> (i32, i32, i32) {
    %c0_i32 = arith.constant 0 : i32
    %c0_i32_0 = arith.constant 0 : i32
    return %arg0, %arg1, %c0_i32 : i32, i32, i32
  }
}

</mosaic_0001>

<llo_original>
// kernel: _masked_fill.1
$region0: #{_masked_fill.1}
  #allocation0 [shape = 'u32[]', space=smem, size = 0x4, offset = 0x4, fixed_abs, tag = 'smem constant byte address 0x4 - core index']
  #allocation1 [shape = 'u32[72,128]{1,0:T(1,128)}', space=vmem, size = 0x9000, scoped, tag = 'internal scratch']
  #allocation2 [shape = 's32[1]{0}', space=sflag, size = 0x4, scoped, tag = 'scoped memory for _masked_fill.1']
  #allocation3 [shape = 'u8[1024]{0}', space=smem, size = 0x400, scoped, tag = 'prefetched SMEM operand 0']
  %s0 = inlined_call_operand.hbm [shape: s32[2,4], index: 0, kind: input, shape index: {}]
  %s1 = inlined_call_operand.hbm [shape: f32[2,64,128], index: 1, kind: input, shape index: {}, may-alias: {1,3}]
  %s2 = inlined_call_operand.vmem [shape: f32[1,128], index: 2, kind: input, shape index: {}]
  %s3 = inlined_call_operand.hbm [shape: f32[2,64,128], index: 3, kind: output, shape index: {}, may-alias: {1,3}]
  %s4 = sld [smem:[#allocation0]]
  $region45: #{_masked_fill.1} parent=0
    _
  %s6 = ssub.s32 1, %s4
  %s7 = scalar_select 0, %s6, %s4
  %s9 = sshll.u32 %s0, 4
  %s10 = int_to_ptr.hbm [resolvable:$true] %s9
  %12 = dma.hbm_to_smem %s10, 32, [#allocation3], [#allocation2]
  %14 = dma.done [#allocation2], 32
  %15 = sfence
  $region1: #{_masked_fill.1} parent=0
    #allocation4 [shape = 'u8[32768]{0}', space=vmem, size = 0x8000, scoped, tag = 'input window, operand 1']
    #allocation5 [shape = 's32[2]{0}', space=sflag, size = 0x8, scoped, tag = 'scoped memory for _masked_fill.1']
    #allocation6 [shape = 's32[2]{0}', space=sflag, size = 0x8, scoped, tag = 'scoped memory for _masked_fill.1']
    #allocation7 [shape = 'u8[32768]{0}', space=vmem, size = 0x8000, scoped, tag = 'output window, operand 0']
    %16 = vsyncpa [#allocation5], 0
    %s17 = scalar_lea.sflag [#allocation5], 1
    %18 = vsyncpa %s17, 0
    %19 = vsyncpa [#allocation6], 0
    %s20 = scalar_lea.sflag [#allocation6], 1
    %21 = vsyncpa %s20, 0
    loop: start=0, step=1, limit=6
    $region2: #{_masked_fill.1} parent=1 // loop_pre_header
      _
    $region3: #{_masked_fill.1} parent=1 // loop_header
      %s23 = sphi 0, %s27
      %p24 = scmp.ge.s32.totalorder %s23, 6
      %s30 = sphi 0, %s42
      %s31 = sphi 0, %s38
      %s32 = sphi 0, %s30
      %s33 = sphi 0, %s31
      %s34 = sphi 0, %s32
      %s35 = sphi 0, %s33
      %s47 = sphi 0, %s49
      %s50 = sphi 0, %s47
      %s51 = sphi 0, %s50
      %s67 = sphi 0, %s51
      %s71 = sphi 0, %s71
      %s73 = sphi 0, %s71
      %s74 = sphi 0, %s73
      %s88 = sphi 0, %s74
      %s96 = sphi 0, %s98
      %s99 = sphi 0, %s96
      %s100 = sphi 0, %s99
      %s116 = sphi 0, %s100
    $region4: #{_masked_fill.1} parent=1 // loop_header_branch
      %26 = sbr.rel (%p24) target = $region8
    $region5: #{_masked_fill.1} parent=1 // loop_body
      %s28 = ssub.s32 %s23, 1
      %s29 = ssub.s32 %s23, 2
      %s36 = sadd.s32 1, %s31
      %p37 = scmp.ge.s32.totalorder %s36, 2
      %s38 = scalar_select %p37, 0, %s36
      %s39 = sadd.s32 1, %s30
      %s40 = scalar_select %p37, %s39, %s30
      %p41 = scmp.ge.s32.totalorder %s40, 2
      %s42 = scalar_select %p41, 0, %s40
      %s43 = ssub.s32 %s30, %s42
      %s44 = ssub.s32 %s31, %s38
      %s45 = sor.u32 %s43, %s44
      %p46 = scmp.eq.s32.totalorder %s45, 0
      %s48 = sadd.s32 %s47, 1
      %s49 = scalar_select %p46, %s47, %s48
      %p52 = pneg %p46
      %p53 = scmp.eq.s32.totalorder %s23, 3
      %p54 = por %p52, %p53
      %p55 = scmp.ne.s32.totalorder %s47, %s50
      %p56 = scmp.eq.s32.totalorder %s23, 0
      %p57 = por %p55, %p56
      %p58 = scmp.ne.s32.totalorder %s47, %s50
      %p59 = scmp.eq.s32.totalorder %s28, 3
      %p60 = por %p58, %p59
      %p61 = scmp.ne.s32.totalorder %s50, %s51
      %p62 = scmp.eq.s32.totalorder %s28, 0
      %p63 = por %p61, %p62
      %p64 = scmp.ne.s32.totalorder %s50, %s51
      %p65 = scmp.eq.s32.totalorder %s29, 3
      %p66 = por %p64, %p65
      %p68 = scmp.ne.s32.totalorder %s51, %s67
      %p69 = scmp.eq.s32.totalorder %s29, 0
      %p70 = por %p68, %p69
      %s72 = sadd.s32 %s71, 1
      %p75 = scmp.eq.s32.totalorder %s23, 3
      %p76 = scmp.ne.s32.totalorder %s71, %s73
      %p77 = scmp.eq.s32.totalorder %s23, 0
      %p78 = por %p76, %p77
      %p79 = scmp.ne.s32.totalorder %s71, %s73
      %p80 = scmp.eq.s32.totalorder %s28, 3
      %p81 = por %p79, %p80
      %p82 = scmp.ne.s32.totalorder %s73, %s74
      %p83 = scmp.eq.s32.totalorder %s28, 0
      %p84 = por %p82, %p83
      %p85 = scmp.ne.s32.totalorder %s73, %s74
      %p86 = scmp.eq.s32.totalorder %s29, 3
      %p87 = por %p85, %p86
      %p89 = scmp.ne.s32.totalorder %s74, %s88
      %p90 = scmp.eq.s32.totalorder %s29, 0
      %p91 = por %p89, %p90
      %s92 = ssub.s32 %s30, %s42
      %s93 = ssub.s32 %s31, %s38
      %s94 = sor.u32 %s92, %s93
      %p95 = scmp.eq.s32.totalorder %s94, 0
      %s97 = sadd.s32 %s96, 1
      %s98 = scalar_select %p95, %s96, %s97
      %p101 = pneg %p95
      %p102 = scmp.eq.s32.totalorder %s23, 3
      %p103 = por %p101, %p102
      %p104 = scmp.ne.s32.totalorder %s96, %s99
      %p105 = scmp.eq.s32.totalorder %s23, 0
      %p106 = por %p104, %p105
      %p107 = scmp.ne.s32.totalorder %s96, %s99
      %p108 = scmp.eq.s32.totalorder %s28, 3
      %p109 = por %p107, %p108
      %p110 = scmp.ne.s32.totalorder %s99, %s100
      %p111 = scmp.eq.s32.totalorder %s28, 0
      %p112 = por %p110, %p111
      %p113 = scmp.ne.s32.totalorder %s99, %s100
      %p114 = scmp.eq.s32.totalorder %s29, 3
      %p115 = por %p113, %p114
      %p117 = scmp.ne.s32.totalorder %s100, %s116
      %p118 = scmp.eq.s32.totalorder %s29, 0
      %p119 = por %p117, %p118
      %p120 = scmp.le.s32.totalorder 1, %s23
      %p121 = scmp.lt.s32.totalorder %s23, 5
      %p122 = pnand %p120, %p121
      %p123 = pneg %p122
      // Predicated region
      $region9: #{_masked_fill.1} parent=5 // pred_check
        _
      $region10: #{_masked_fill.1} parent=5 // pred_check_branch
        %125 = sbr.rel (%p122) target = $region12
      $region11: #{_masked_fill.1} parent=5 // pred_region
        %s126 = ssub.s32 %s23, 1
        // Predicated region
        $region13: #{_masked_fill.1} parent=11 // pred_check
          %p127 = pneg %p84
        $region14: #{_masked_fill.1} parent=11 // pred_check_branch
          %129 = sbr.rel (%p127) target = $region16
        $region15: #{_masked_fill.1} parent=11 // pred_region
          _
        $region16: #{_masked_fill.1} parent=11 // pred_fallthru
          _
      $region12: #{_masked_fill.1} parent=5 // pred_fallthru
        _
      %p130 = scmp.lt.s32.totalorder %s23, 4
      // Predicated region
      $region17: #{_masked_fill.1} parent=5 // pred_check
        %p131 = pneg %p130
      $region18: #{_masked_fill.1} parent=5 // pred_check_branch
        %133 = sbr.rel (%p131) target = $region20
      $region19: #{_masked_fill.1} parent=5 // pred_region
        // Predicated region
        $region21: #{_masked_fill.1} parent=19 // pred_check
          %p134 = pneg %p57
        $region22: #{_masked_fill.1} parent=19 // pred_check_branch
          %136 = sbr.rel (%p134) target = $region24
        $region23: #{_masked_fill.1} parent=19 // pred_region
          %s137 = sand.u32 %s47, 1
          %s138 = scalar_lea.sflag [#allocation5], %s137
          %s139 = sand.u32 %s47, 1
          %s140 = smul.addr %s139, 32
          %s141 = scalar_lea.vmem [#allocation4], %s140
          %s142 = smul.u32 4, %s31
          %144 = vsyncadd %s138, 0
          %s145 = smul.addr %s30, 8
          %s146 = sadd.s32 %s142, %s145
          %s147 = smul.addr %s146, 8
          %s148 = scalar_lea.hbm %s1, %s147
          %s149 = sshll.u32 %s148, 4
          %s150 = int_to_ptr.hbm [resolvable:$true] %s149
          %s151 = sshll.u32 %s141, 4
          %s152 = int_to_ptr.vmem [resolvable:$true] %s151
          %157 = dma.hbm_to_vmem [thread:$0]  %s150, 512, %s152, %s138, 128, 128, 8
        $region24: #{_masked_fill.1} parent=19 // pred_fallthru
          _
      $region20: #{_masked_fill.1} parent=5 // pred_fallthru
        _
      %p158 = scmp.le.s32.totalorder 1, %s23
      %p159 = scmp.lt.s32.totalorder %s23, 5
      %p160 = pnand %p158, %p159
      %p161 = pneg %p160
      // Predicated region
      $region25: #{_masked_fill.1} parent=5 // pred_check
        _
      $region26: #{_masked_fill.1} parent=5 // pred_check_branch
        %163 = sbr.rel (%p160) target = $region28
      $region27: #{_masked_fill.1} parent=5 // pred_region
        %s164 = ssub.s32 %s23, 1
        %s165 = sand.u32 %s50, 1
        %s166 = scalar_lea.sflag [#allocation5], %s165
        %s167 = sand.u32 %s50, 1
        %s168 = smul.addr %s167, 32
        %s169 = scalar_lea.vmem [#allocation4], %s168
        // Predicated region
        $region29: #{_masked_fill.1} parent=27 // pred_check
          %p170 = pneg %p63
        $region30: #{_masked_fill.1} parent=27 // pred_check_branch
          %172 = sbr.rel (%p170) target = $region32
        $region31: #{_masked_fill.1} parent=27 // pred_region
          %174 = dma.done %s166, 512
        $region32: #{_masked_fill.1} parent=27 // pred_fallthru
          _
        %s175 = sand.u32 %s50, 1
        %s176 = scalar_lea.sflag [#allocation5], %s175
        %s177 = sand.u32 %s50, 1
        %s178 = smul.addr %s177, 32
        %s179 = scalar_lea.vmem [#allocation4], %s178
        %p180 = pneg %p63
        %p181 = pneg %p60
        %p182 = pneg %p84
        %p183 = pneg %p81
        %p184 = pneg %p112
        %p185 = pneg %p109
        %s186 = sand.u32 %s99, 1
        %s187 = scalar_lea.sflag [#allocation6], %s186
        %s188 = sand.u32 %s99, 1
        %s189 = smul.addr %s188, 32
        %s190 = scalar_lea.vmem [#allocation7], %s189
        %s191 = smul.u32 4, %s33
        %s192 = smul.u32 4, %s33
        %v193 = vld [vmem:[%s169] sm:$0xff]
        %v194 = vld [vmem:[%s169 + $0x8] sm:$0xff]
        %v195 = vld [vmem:[%s169 + $0x10] sm:$0xff]
        %v196 = vld [vmem:[%s169 + $0x18] sm:$0xff]
        %v197 = vld [vmem:[%s2] sm:$0x1]
        %s198 = smul.u32 %s33, 32
        %v199 = vlaneseq
        %v200 = vshrl.u32 %v199, 7
        %v201 = vadd.s32 %v200, 8
        %v202 = vadd.s32 %v200, 16
        %v203 = vadd.s32 %v200, 24
        %v204 = vstv %s198
        %v205 = vadd.s32 %v204, %v200
        %v206 = vadd.s32 %v204, %v201
        %v207 = vadd.s32 %v204, %v202
        %v208 = vadd.s32 %v204, %v203
        %s209 = smul.u32 %s32, 128
        %s210 = sld [smem:[#allocation3 + %s209]]
        %v211 = vstv %s210
        %vm212 = vcmp.ge.s32.totalorder %v205, %v211
        %vm213 = vcmp.ge.s32.totalorder %v206, %v211
        %vm214 = vcmp.ge.s32.totalorder %v207, %v211
        %vm215 = vcmp.ge.s32.totalorder %v208, %v211
        %s216 = sadd.s32 %s210, 10
        %v217 = vstv %s216
        %vm218 = vcmp.lt.s32.totalorder %v205, %v217
        %vm219 = vcmp.lt.s32.totalorder %v206, %v217
        %vm220 = vcmp.lt.s32.totalorder %v207, %v217
        %vm221 = vcmp.lt.s32.totalorder %v208, %v217
        %vm222 = vmand %vm212, %vm218
        %vm223 = vmand %vm213, %vm219
        %vm224 = vmand %vm214, %vm220
        %vm225 = vmand %vm215, %vm221
        %s226 = sadd.s32 %s209, 1
        %s227 = sld [smem:[#allocation3 + %s226]]
        %v228 = vstv %s227
        %vm229 = vcmp.ge.s32.totalorder %v205, %v228
        %vm230 = vcmp.ge.s32.totalorder %v206, %v228
        %vm231 = vcmp.ge.s32.totalorder %v207, %v228
        %vm232 = vcmp.ge.s32.totalorder %v208, %v228
        %s233 = sadd.s32 %s227, 10
        %v234 = vstv %s233
        %vm235 = vcmp.lt.s32.totalorder %v205, %v234
        %vm236 = vcmp.lt.s32.totalorder %v206, %v234
        %vm237 = vcmp.lt.s32.totalorder %v207, %v234
        %vm238 = vcmp.lt.s32.totalorder %v208, %v234
        %vm239 = vmand %vm229, %vm235
        %vm240 = vmand %vm230, %vm236
        %vm241 = vmand %vm231, %vm237
        %vm242 = vmand %vm232, %vm238
        %vm243 = vmor %vm222, %vm239
        %vm244 = vmor %vm223, %vm240
        %vm245 = vmor %vm224, %vm241
        %vm246 = vmor %vm225, %vm242
        %s247 = sadd.s32 %s209, 2
        %s248 = sld [smem:[#allocation3 + %s247]]
        %v249 = vstv %s248
        %vm250 = vcmp.ge.s32.totalorder %v205, %v249
        %vm251 = vcmp.ge.s32.totalorder %v206, %v249
        %vm252 = vcmp.ge.s32.totalorder %v207, %v249
        %vm253 = vcmp.ge.s32.totalorder %v208, %v249
        %s254 = sadd.s32 %s248, 10
        %v255 = vstv %s254
        %vm256 = vcmp.lt.s32.totalorder %v205, %v255
        %vm257 = vcmp.lt.s32.totalorder %v206, %v255
        %vm258 = vcmp.lt.s32.totalorder %v207, %v255
        %vm259 = vcmp.lt.s32.totalorder %v208, %v255
        %vm260 = vmand %vm250, %vm256
        %vm261 = vmand %vm251, %vm257
        %vm262 = vmand %vm252, %vm258
        %vm263 = vmand %vm253, %vm259
        %vm264 = vmor %vm243, %vm260
        %vm265 = vmor %vm244, %vm261
        %vm266 = vmor %vm245, %vm262
        %vm267 = vmor %vm246, %vm263
        %s268 = sadd.s32 %s209, 3
        %s269 = sld [smem:[#allocation3 + %s268]]
        %v270 = vstv %s269
        %vm271 = vcmp.ge.s32.totalorder %v205, %v270
        %vm272 = vcmp.ge.s32.totalorder %v206, %v270
        %vm273 = vcmp.ge.s32.totalorder %v207, %v270
        %vm274 = vcmp.ge.s32.totalorder %v208, %v270
        %s275 = sadd.s32 %s269, 10
        %v276 = vstv %s275
        %vm277 = vcmp.lt.s32.totalorder %v205, %v276
        %vm278 = vcmp.lt.s32.totalorder %v206, %v276
        %vm279 = vcmp.lt.s32.totalorder %v207, %v276
        %vm280 = vcmp.lt.s32.totalorder %v208, %v276
        %vm281 = vmand %vm271, %vm277
        %vm282 = vmand %vm272, %vm278
        %vm283 = vmand %vm273, %vm279
        %vm284 = vmand %vm274, %vm280
        %vm285 = vmor %vm264, %vm281
        %vm286 = vmor %vm265, %vm282
        %vm287 = vmor %vm266, %vm283
        %vm288 = vmor %vm267, %vm284
        %v289 = vsel %vm285, 1, 0
        %v290 = vsel %vm286, 1, 0
        %v291 = vsel %vm287, 1, 0
        %v292 = vsel %vm288, 1, 0
        %vm293 = vcmp.eq.s32.totalorder %v289, 1
        %vm294 = vcmp.eq.s32.totalorder %v290, 1
        %vm295 = vcmp.eq.s32.totalorder %v291, 1
        %vm296 = vcmp.eq.s32.totalorder %v292, 1
        %v298 = vperm.slane %v197, 0
        %v300 = vsel %vm293, %v298, %v193
        %v301 = vsel %vm294, %v298, %v194
        %v302 = vsel %vm295, %v298, %v195
        %v303 = vsel %vm296, %v298, %v196
        %304 = vst [vmem:[%s190] sm:$0xff] %v300
        %305 = vst [vmem:[%s190 + $0x8] sm:$0xff] %v301
        %306 = vst [vmem:[%s190 + $0x10] sm:$0xff] %v302
        %307 = vst [vmem:[%s190 + $0x18] sm:$0xff] %v303
        %s308 = sand.u32 %s99, 1
        %s309 = scalar_lea.sflag [#allocation6], %s308
        %s310 = sand.u32 %s99, 1
        %s311 = smul.addr %s310, 32
        %s312 = scalar_lea.vmem [#allocation7], %s311
        // Predicated region
        $region33: #{_masked_fill.1} parent=27 // pred_check
          %p313 = pneg %p109
        $region34: #{_masked_fill.1} parent=27 // pred_check_branch
          %315 = sbr.rel (%p313) target = $region36
        $region35: #{_masked_fill.1} parent=27 // pred_region
          %s316 = smul.u32 4, %s33
          %318 = vsyncadd %s309, 0
          %s319 = smul.addr %s32, 8
          %s320 = sadd.s32 %s316, %s319
          %s321 = smul.addr %s320, 8
          %s322 = scalar_lea.hbm %s3, %s321
          %s323 = sshll.u32 %s312, 4
          %s324 = int_to_ptr.vmem [resolvable:$true] %s323
          %s325 = sshll.u32 %s322, 4
          %s326 = int_to_ptr.hbm [resolvable:$true] %s325
          %331 = dma.vmem_to_hbm [thread:$0]  %s324, 512, %s326, %s309, 128, 128, 8
        $region36: #{_masked_fill.1} parent=27 // pred_fallthru
          _
      $region28: #{_masked_fill.1} parent=5 // pred_fallthru
        _
      %p332 = scmp.le.s32.totalorder 2, %s23
      // Predicated region
      $region37: #{_masked_fill.1} parent=5 // pred_check
        %p333 = pneg %p332
      $region38: #{_masked_fill.1} parent=5 // pred_check_branch
        %335 = sbr.rel (%p333) target = $region40
      $region39: #{_masked_fill.1} parent=5 // pred_region
        %s336 = ssub.s32 %s23, 2
        // Predicated region
        $region41: #{_masked_fill.1} parent=39 // pred_check
          %p337 = pneg %p115
        $region42: #{_masked_fill.1} parent=39 // pred_check_branch
          %339 = sbr.rel (%p337) target = $region44
        $region43: #{_masked_fill.1} parent=39 // pred_region
          %s340 = sand.u32 %s100, 1
          %s341 = scalar_lea.sflag [#allocation6], %s340
          %s342 = sand.u32 %s100, 1
          %s343 = smul.addr %s342, 32
          %s344 = scalar_lea.vmem [#allocation7], %s343
          %346 = dma.done %s341, 512
        $region44: #{_masked_fill.1} parent=39 // pred_fallthru
          _
      $region40: #{_masked_fill.1} parent=5 // pred_fallthru
        _
    $region6: #{_masked_fill.1} parent=1 // loop_footer
      %s27 = sadd.s32 1, %s23
    $region7: #{_masked_fill.1} parent=1 // loop_footer_branch
      %22 = sbr.rel target = $region3
    $region8: #{_masked_fill.1} parent=1 // loop_exit
      _
    %347 = vsyncpa [#allocation5], 1
    %s348 = scalar_lea.sflag [#allocation5], 1
    %349 = vsyncpa %s348, 1
    %350 = vsyncpa [#allocation6], 1
    %s351 = scalar_lea.sflag [#allocation6], 1
    %352 = vsyncpa %s351, 1

</llo_original>
